<compile_context>
chip_gen: v7x
topology: tpu7x:2x2x1
jax: 0.10.0
libtpu: 0.0.40
codegen_flags: <defaults>
</compile_context>

<pallas_src>
import functools

import jax
import jax.numpy as jnp
from jax.experimental import pallas as pl
from jax.experimental.pallas import tpu as pltpu

LANE = 128      # channel / contraction padding granularity
TM_CAP = 256    # max rows (B*Ho*Wo positions) per tile
TK_CAP = 512    # max contraction chunk per grid step

# VMEM budget at the largest realistic ResNet layer (3x3, Cin=Cout=512):
#   cols tile   256x512 bf16 x2buf = 0.5 MiB
#   weights    4608x512 bf16 x2buf = 9.0 MiB (resident, constant index_map)
#   acc scratch 256x512 f32        = 0.5 MiB
#   y out tile  256x512 bf16 x2buf = 0.5 MiB ; stats ~32 KiB
# ~11 MiB total -> 32 MiB is deliberate headroom, fits v7x's 64 MiB physical.
_MM_PARAMS = pltpu.CompilerParams(
    dimension_semantics=("parallel", "arbitrary"),
    vmem_limit_bytes=32 * 1024 * 1024)
_BN_PARAMS = pltpu.CompilerParams(
    dimension_semantics=("parallel",),
    vmem_limit_bytes=32 * 1024 * 1024)


# ----------------------------------------------------------------------------
# Kernel 1: tiled conv matmul (resident weights) + BN partial-stats epilogue
# ----------------------------------------------------------------------------

def _conv_bnstats_kernel(cols_ref, w_ref, y_ref, stats_ref, acc_ref, *, tk):
    k = pl.program_id(1)

    @pl.when(k == 0)
    def _():
        acc_ref[...] = jnp.zeros_like(acc_ref)

    koff = pl.multiple_of(k * tk, tk)
    acc_ref[...] += jnp.dot(cols_ref[...], w_ref[pl.ds(koff, tk), :],
                            preferred_element_type=jnp.float32)

    @pl.when(k == pl.num_programs(1) - 1)
    def _():
        acc = acc_ref[...]
        y_ref[...] = acc.astype(y_ref.dtype)
        # per-channel partial stats for this M tile: row 0 = sum, row 1 = sumsq
        stats_ref[...] = jnp.zeros_like(stats_ref)
        stats_ref[0:1, :] = jnp.sum(acc, axis=0, keepdims=True)
        stats_ref[1:2, :] = jnp.sum(acc * acc, axis=0, keepdims=True)


def _conv_bn_matmul(cols, w2d, tm, tk):
    M_pad, K_pad = cols.shape
    _, N_pad = w2d.shape
    n_mt = M_pad // tm
    grid = (n_mt, K_pad // tk)
    kern = functools.partial(_conv_bnstats_kernel, tk=tk)
    return pl.pallas_call(
        kern,
        out_shape=(jax.ShapeDtypeStruct((M_pad, N_pad), jnp.bfloat16),
                   jax.ShapeDtypeStruct((n_mt * 8, N_pad), jnp.float32)),
        grid_spec=pltpu.PrefetchScalarGridSpec(
            num_scalar_prefetch=0,
            grid=grid,
            in_specs=[pl.BlockSpec((tm, tk), lambda i, k: (i, k)),
                      # full weight block, constant index -> fetched once,
                      # stays VMEM-resident for the whole kernel.
                      pl.BlockSpec((K_pad, N_pad), lambda i, k: (0, 0))],
            out_specs=(pl.BlockSpec((tm, N_pad), lambda i, k: (i, 0)),
                       pl.BlockSpec((8, N_pad), lambda i, k: (i, 0))),
            scratch_shapes=[pltpu.VMEM((tm, N_pad), jnp.float32)]),
        compiler_params=_MM_PARAMS,
    )(cols, w2d)


# ----------------------------------------------------------------------------
# Kernel 2: streaming BN apply (+ optional residual add) (+ optional ReLU)
# ----------------------------------------------------------------------------

def _bn_apply_kernel(y_ref, scale_ref, shift_ref, o_ref, *, relu):
    out = y_ref[...].astype(jnp.float32) * scale_ref[...] + shift_ref[...]
    if relu:
        out = jnp.maximum(out, 0.0)
    o_ref[...] = out.astype(o_ref.dtype)


def _bn_apply_add_relu_kernel(y_ref, r_ref, scale_ref, shift_ref, o_ref):
    out = (y_ref[...].astype(jnp.float32) * scale_ref[...] + shift_ref[...]
           + r_ref[...].astype(jnp.float32))
    o_ref[...] = jnp.maximum(out, 0.0).astype(o_ref.dtype)


def _bn_apply(y, scale, shift, tm, *, relu, residual=None,
              out_dtype=jnp.float32):
    M_pad, N_pad = y.shape
    grid = (M_pad // tm,)
    row_spec = pl.BlockSpec((tm, N_pad), lambda i: (i, 0))
    vec_spec = pl.BlockSpec((1, N_pad), lambda i: (0, 0))
    if residual is None:
        kern = functools.partial(_bn_apply_kernel, relu=relu)
        in_specs = [row_spec, vec_spec, vec_spec]
        args = (y, scale, shift)
    else:
        kern = _bn_apply_add_relu_kernel
        in_specs = [row_spec, row_spec, vec_spec, vec_spec]
        args = (y, residual, scale, shift)
    return pl.pallas_call(
        kern,
        out_shape=jax.ShapeDtypeStruct((M_pad, N_pad), out_dtype),
        grid_spec=pltpu.PrefetchScalarGridSpec(
            num_scalar_prefetch=0, grid=grid,
            in_specs=in_specs, out_specs=row_spec),
        compiler_params=_BN_PARAMS,
    )(*args)


# ----------------------------------------------------------------------------
# Plain-JAX glue: im2col, padding, weight reshape, stats folding
# ----------------------------------------------------------------------------

def _round_up(x, m):
    return (x + m - 1) // m * m


def _vec_padded(v, target, fill):
    v = v.astype(jnp.float32)
    pad = target - v.shape[0]
    if pad:
        v = jnp.concatenate([v, jnp.full((pad,), fill, jnp.float32)])
    return v


def _im2col(x_nhwc, k, stride, padding):
    """(N,H,W,C) -> (N*Ho*Wo, k*k*C) patch matrix."""
    N, H, W, C = x_nhwc.shape
    xp = jnp.pad(x_nhwc, ((0, 0), (padding, padding), (padding, padding), (0, 0)))
    Ho = (H + 2 * padding - k) // stride + 1
    Wo = (W + 2 * padding - k) // stride + 1
    taps = []
    for di in range(k):
        for dj in range(k):
            taps.append(xp[:, di:di + stride * Ho:stride,
                           dj:dj + stride * Wo:stride, :])
    patches = jnp.stack(taps, axis=3)                    # (N, Ho, Wo, k*k, C)
    return patches.reshape(N * Ho * Wo, k * k * C), N, Ho, Wo


def _fold_stats(stats, gamma_p, beta_p, count, eps):
    """(n_mt*8, N_pad) partial sums -> (1, N_pad) BN scale & shift."""
    n = stats.shape[-1]
    st = stats.reshape(-1, 8, n)
    s = jnp.sum(st[:, 0, :], axis=0)
    ss = jnp.sum(st[:, 1, :], axis=0)
    mean = s / count
    var = jnp.maximum(ss / count - mean * mean, 0.0)
    inv_std = jax.lax.rsqrt(var + eps)
    scale = gamma_p * inv_std
    shift = beta_p - mean * scale
    return scale.reshape(1, n), shift.reshape(1, n)


def _conv2d_bnstats(x_nhwc, w_oikk, gamma, beta, stride, padding, eps):
    """Conv as tiled MXU matmul + batch-BN scale/shift for its output.

    Returns (y [bf16, (M_pad, N_pad)], scale, shift, (N, Ho, Wo, M, tm, N_pad)).
    """
    Co, Ci, k, _ = w_oikk.shape
    cols, N, Ho, Wo = _im2col(x_nhwc.astype(jnp.bfloat16), k, stride, padding)
    M, K = cols.shape                     # K = k*k*Ci, padded AFTER im2col
    N_pad = _round_up(Co, LANE)
    tm = min(TM_CAP, _round_up(M, 8))
    tk = min(TK_CAP, _round_up(K, LANE))
    M_pad = _round_up(M, tm)
    K_pad = _round_up(K, tk)
    cols = jnp.pad(cols, ((0, M_pad - M), (0, K_pad - K)))
    w = jnp.transpose(w_oikk, (2, 3, 1, 0)).astype(jnp.float32)
    w = w.reshape(k * k * Ci, Co)
    w = jnp.pad(w, ((0, K_pad - K), (0, N_pad - Co))).astype(jnp.bfloat16)
    y, stats = _conv_bn_matmul(cols, w, tm, tk)
    gamma_p = _vec_padded(gamma, N_pad, 1.0)
    beta_p = _vec_padded(beta, N_pad, 0.0)
    scale, shift = _fold_stats(stats, gamma_p, beta_p, M, eps)
    return y, scale, shift, (N, Ho, Wo, M, tm, N_pad)


# ----------------------------------------------------------------------------
# ResidualBlock forward (training-mode BatchNorm, batch statistics)
# ----------------------------------------------------------------------------

def residual_block_forward(x_nchw, params, *, first_stride, eps=1e-5):
    x = jnp.transpose(x_nchw, (0, 2, 3, 1)).astype(jnp.float32)   # NHWC
    B, H, W, Cin = x.shape
    Cout = params["conv1_w"].shape[0]

    # left: conv3x3(stride) -> fused BN + ReLU (bf16 intermediate traffic)
    y1, sc1, sh1, (N, Ho, Wo, M1, tm1, N_pad) = _conv2d_bnstats(
        x, params["conv1_w"], params["bn1_w"], params["bn1_b"],
        first_stride, 1, eps)
    a1 = _bn_apply(y1, sc1, sh1, tm1, relu=True, out_dtype=jnp.bfloat16)
    a1_img = a1[:M1, :Cout].reshape(N, Ho, Wo, Cout)

    # left: conv3x3(1); BN2 apply deferred -> fused with residual add + ReLU
    y2, sc2, sh2, (_, Ho2, Wo2, M2, tm2, _) = _conv2d_bnstats(
        a1_img, params["conv2_w"], params["bn2_w"], params["bn2_b"], 1, 1, eps)
    M_pad2 = y2.shape[0]

    # right branch: conv1x1(stride) -> BN, or identity
    if first_stride > 1:
        yr, scr, shr, (_, _, _, Mr, tmr, _) = _conv2d_bnstats(
            x, params["convr_w"], params["bnr_w"], params["bnr_b"],
            first_stride, 0, eps)
        right = _bn_apply(yr, scr, shr, tmr, relu=False, out_dtype=jnp.float32)
    else:
        assert Cin == Cout, "identity shortcut requires in_feats == out_feats"
        right = x.reshape(B * H * W, Cin)
        right = jnp.pad(right, ((0, M_pad2 - B * H * W), (0, N_pad - Cin)))

    assert right.shape == y2.shape, f"Shapes don't match: {y2.shape} {right.shape}"

    # fused: BN2 apply + residual add + final ReLU
    out = _bn_apply(y2, sc2, sh2, tm2, relu=True, residual=right,
                    out_dtype=jnp.float32)
    out = out[:M2, :Cout].reshape(N, Ho2, Wo2, Cout)
    return jnp.transpose(out, (0, 3, 1, 2))               # back to NCHW


# ----------------------------------------------------------------------------
# Deterministic parameter init (module __init__ semantics)
# ----------------------------------------------------------------------------

def _xavier_normal(key, out_c, in_c, k):
    fan_in, fan_out = in_c * k * k, out_c * k * k
    std = (2.0 / (fan_in + fan_out)) ** 0.5
    return std * jax.random.normal(key, (out_c, in_c, k, k), jnp.float32)


def init_params(key, in_feats, out_feats, first_stride):
    k1, k2, k3 = jax.random.split(key, 3)
    params = {
        "conv1_w": _xavier_normal(k1, out_feats, in_feats, 3),
        "bn1_w": jnp.ones((out_feats,), jnp.float32),
        "bn1_b": jnp.zeros((out_feats,), jnp.float32),
        "conv2_w": _xavier_normal(k2, out_feats, out_feats, 3),
        "bn2_w": jnp.ones((out_feats,), jnp.float32),
        "bn2_b": jnp.zeros((out_feats,), jnp.float32),
    }
    if first_stride > 1:
        params["convr_w"] = _xavier_normal(k3, out_feats, in_feats, 1)
        params["bnr_w"] = jnp.ones((out_feats,), jnp.float32)
        params["bnr_b"] = jnp.zeros((out_feats,), jnp.float32)
    return params


if __name__ == "__main__":
    key = jax.random.PRNGKey(0)
    kx, kp = jax.random.split(key)

    B, in_feats, out_feats, H, W = 2, 4, 8, 16, 16
    first_stride = 2                           # exercises the downsample branch

    x = jax.random.normal(kx, (B, in_feats, H, W), jnp.float32)   # NCHW (PyTorch)
    params = init_params(kp, in_feats, out_feats, first_stride)

    fwd = jax.jit(functools.partial(residual_block_forward,
                                    first_stride=first_stride))
    out = jax.block_until_ready(fwd(x, params))

    assert out.shape == (B, out_feats, H // first_stride, W // first_stride), out.shape
    assert bool(jnp.all(out >= 0.0))           # final ReLU
    assert bool(jnp.all(jnp.isfinite(out)))
    print("KERNEL_OK")
</pallas_src>

<mosaic_0001>
module attributes {stable_mosaic.version = 11 : i64} {
  func.func @_bn_apply_kernel(%arg0: i32, %arg1: memref<128x128xbf16, #tpu.memory_space<vmem>>, %arg2: memref<1x128xf32, #tpu.memory_space<vmem>>, %arg3: memref<1x128xf32, #tpu.memory_space<vmem>>, %arg4: memref<128x128xbf16, #tpu.memory_space<vmem>>) attributes {dimension_semantics = [#tpu.dimension_semantics<parallel>], iteration_bounds = array<i64: 1>, scalar_prefetch = 0 : i64, scratch_operands = 0 : i64, tpu.core_type = #tpu.core_type<tc>, window_params = [{transform_indices = @transform_0, window_bounds = array<i64: 128, 128>}, {pipeline_mode = #tpu.pipeline_mode<synchronous>, transform_indices = @transform_1, window_bounds = array<i64: 1, 128>}, {pipeline_mode = #tpu.pipeline_mode<synchronous>, transform_indices = @transform_2, window_bounds = array<i64: 1, 128>}, {transform_indices = @transform_3, window_bounds = array<i64: 128, 128>}]} {
    %c0 = arith.constant 0 : index
    %c0_0 = arith.constant 0 : index
    %0 = vector.load %arg1[%c0, %c0_0] : memref<128x128xbf16, #tpu.memory_space<vmem>>, vector<128x128xbf16>
    %1 = arith.extf %0 : vector<128x128xbf16> to vector<128x128xf32>
    %c0_1 = arith.constant 0 : index
    %c0_2 = arith.constant 0 : index
    %2 = vector.load %arg2[%c0_1, %c0_2] : memref<1x128xf32, #tpu.memory_space<vmem>>, vector<1x128xf32>
    %3 = vector.broadcast %2 : vector<1x128xf32> to vector<128x128xf32>
    %4 = arith.mulf %1, %3 : vector<128x128xf32>
    %c0_3 = arith.constant 0 : index
    %c0_4 = arith.constant 0 : index
    %5 = vector.load %arg3[%c0_3, %c0_4] : memref<1x128xf32, #tpu.memory_space<vmem>>, vector<1x128xf32>
    %6 = vector.broadcast %5 : vector<1x128xf32> to vector<128x128xf32>
    %7 = arith.addf %4, %6 : vector<128x128xf32>
    %cst = arith.constant 0.000000e+00 : f32
    %8 = vector.broadcast %cst : f32 to vector<128x128xf32>
    %9 = arith.maximumf %7, %8 : vector<128x128xf32>
    %10 = arith.truncf %9 : vector<128x128xf32> to vector<128x128xbf16>
    %c0_5 = arith.constant 0 : index
    %c0_6 = arith.constant 0 : index
    %11 = vector.load %arg4[%c0_5, %c0_6] : memref<128x128xbf16, #tpu.memory_space<vmem>>, vector<128x128xbf16>
    tpu.vector_store %arg4[%c0_5, %c0_6], %10 {strides = array<i32>} : memref<128x128xbf16, #tpu.memory_space<vmem>>, vector<128x128xbf16>,
    return
  }
  func.func @transform_0(%arg0: i32) -> (i32, i32) {
    %c0_i32 = arith.constant 0 : i32
    %c0_i32_0 = arith.constant 0 : i32
    return %arg0, %c0_i32 : i32, i32
  }
  func.func @transform_1(%arg0: i32) -> (i32, i32) {
    %c0_i32 = arith.constant 0 : i32
    %c0_i32_0 = arith.constant 0 : i32
    %c0_i32_1 = arith.constant 0 : i32
    return %c0_i32, %c0_i32_0 : i32, i32
  }
  func.func @transform_2(%arg0: i32) -> (i32, i32) {
    %c0_i32 = arith.constant 0 : i32
    %c0_i32_0 = arith.constant 0 : i32
    %c0_i32_1 = arith.constant 0 : i32
    return %c0_i32, %c0_i32_0 : i32, i32
  }
  func.func @transform_3(%arg0: i32) -> (i32, i32) {
    %c0_i32 = arith.constant 0 : i32
    %c0_i32_0 = arith.constant 0 : i32
    return %arg0, %c0_i32 : i32, i32
  }
}

module attributes {stable_mosaic.version = 11 : i64} {
  func.func @_conv_bnstats_kernel(%arg0: i32, %arg1: i32, %arg2: memref<128x128xbf16, #tpu.memory_space<vmem>>, %arg3: memref<128x128xbf16, #tpu.memory_space<vmem>>, %arg4: memref<128x128xbf16, #tpu.memory_space<vmem>>, %arg5: memref<8x128xf32, #tpu.memory_space<vmem>>, %arg6: memref<128x128xf32, #tpu.memory_space<vmem>>) attributes {dimension_semantics = [#tpu.dimension_semantics<parallel>, #tpu.dimension_semantics<arbitrary>], iteration_bounds = array<i64: 1, 1>, scalar_prefetch = 0 : i64, scratch_operands = 1 : i64, tpu.core_type = #tpu.core_type<tc>, window_params = [{transform_indices = @transform_0, window_bounds = array<i64: 128, 128>}, {pipeline_mode = #tpu.pipeline_mode<synchronous>, transform_indices = @transform_1, window_bounds = array<i64: 128, 128>}, {transform_indices = @transform_2, window_bounds = array<i64: 128, 128>}, {transform_indices = @transform_3, window_bounds = array<i64: 8, 128>}]} {
    %c0_i32 = arith.constant 0 : i32
    %0 = arith.cmpi eq, %arg1, %c0_i32 : i32
    %1 = arith.extui %0 : i1 to i32
    %c0_i32_0 = arith.constant 0 : i32
    %2 = arith.cmpi ne, %1, %c0_i32_0 : i32
    scf.if %2 {
      %cst_9 = arith.constant 0.000000e+00 : f32
      %15 = vector.broadcast %cst_9 : f32 to vector<128x128xf32>
      %c0_10 = arith.constant 0 : index
      %c0_11 = arith.constant 0 : index
      %16 = vector.load %arg6[%c0_10, %c0_11] : memref<128x128xf32, #tpu.memory_space<vmem>>, vector<128x128xf32>
      tpu.vector_store %arg6[%c0_10, %c0_11], %15 {strides = array<i32>} : memref<128x128xf32, #tpu.memory_space<vmem>>, vector<128x128xf32>,
    } else {
    }
    %c128_i32 = arith.constant 128 : i32
    %3 = arith.muli %arg1, %c128_i32 : i32
    %4 = tpu.assume_multiple %3, 128 : i32
    %c0 = arith.constant 0 : index
    %c0_1 = arith.constant 0 : index
    %5 = vector.load %arg6[%c0, %c0_1] : memref<128x128xf32, #tpu.memory_space<vmem>>, vector<128x128xf32>
    %c0_2 = arith.constant 0 : index
    %c0_3 = arith.constant 0 : index
    %6 = vector.load %arg2[%c0_2, %c0_3] : memref<128x128xbf16, #tpu.memory_space<vmem>>, vector<128x128xbf16>
    %7 = arith.index_cast %4 : i32 to index
    %c0_4 = arith.constant 0 : index
    %8 = vector.load %arg3[%7, %c0_4] : memref<128x128xbf16, #tpu.memory_space<vmem>>, vector<128x128xbf16>
    %cst = arith.constant dense<0.000000e+00> : vector<128x128xf32>
    %9 = tpu.matmul %6, %8, %cst {dimension_numbers = #tpu.dot_dimension_numbers<[1], [0], [0], [1], [0, 0, 1, 1], [], []>} : vector<128x128xbf16>, vector<128x128xbf16>, vector<128x128xf32> -> vector<128x128xf32>
    %10 = arith.addf %5, %9 : vector<128x128xf32>
    %c0_5 = arith.constant 0 : index
    %c0_6 = arith.constant 0 : index
    %11 = vector.load %arg6[%c0_5, %c0_6] : memref<128x128xf32, #tpu.memory_space<vmem>>, vector<128x128xf32>
    tpu.vector_store %arg6[%c0_5, %c0_6], %10 {strides = array<i32>} : memref<128x128xf32, #tpu.memory_space<vmem>>, vector<128x128xf32>,
    %c0_i32_7 = arith.constant 0 : i32
    %12 = arith.cmpi eq, %arg1, %c0_i32_7 : i32
    %13 = arith.extui %12 : i1 to i32
    %c0_i32_8 = arith.constant 0 : i32
    %14 = arith.cmpi ne, %13, %c0_i32_8 : i32
    scf.if %14 {
      %c0_9 = arith.constant 0 : index
      %c0_10 = arith.constant 0 : index
      %15 = vector.load %arg6[%c0_9, %c0_10] : memref<128x128xf32, #tpu.memory_space<vmem>>, vector<128x128xf32>
      %16 = arith.truncf %15 : vector<128x128xf32> to vector<128x128xbf16>
      %c0_11 = arith.constant 0 : index
      %c0_12 = arith.constant 0 : index
      %17 = vector.load %arg4[%c0_11, %c0_12] : memref<128x128xbf16, #tpu.memory_space<vmem>>, vector<128x128xbf16>
      tpu.vector_store %arg4[%c0_11, %c0_12], %16 {strides = array<i32>} : memref<128x128xbf16, #tpu.memory_space<vmem>>, vector<128x128xbf16>,
      %cst_13 = arith.constant 0.000000e+00 : f32
      %18 = vector.broadcast %cst_13 : f32 to vector<8x128xf32>
      %c0_14 = arith.constant 0 : index
      %c0_15 = arith.constant 0 : index
      %19 = vector.load %arg5[%c0_14, %c0_15] : memref<8x128xf32, #tpu.memory_space<vmem>>, vector<8x128xf32>
      tpu.vector_store %arg5[%c0_14, %c0_15], %18 {strides = array<i32>} : memref<8x128xf32, #tpu.memory_space<vmem>>, vector<8x128xf32>,
      %cst_16 = arith.constant dense<0.000000e+00> : vector<128xf32>
      %20 = vector.multi_reduction <add>, %15, %cst_16 [0] : vector<128x128xf32> to vector<128xf32>
      %21 = vector.shape_cast %20 : vector<128xf32> to vector<1x128xf32>
      %c0_17 = arith.constant 0 : index
      %c0_18 = arith.constant 0 : index
      %22 = vector.load %arg5[%c0_17, %c0_18] : memref<8x128xf32, #tpu.memory_space<vmem>>, vector<1x128xf32>
      tpu.vector_store %arg5[%c0_17, %c0_18], %21 {strides = array<i32>} : memref<8x128xf32, #tpu.memory_space<vmem>>, vector<1x128xf32>,
      %23 = arith.mulf %15, %15 : vector<128x128xf32>
      %cst_19 = arith.constant dense<0.000000e+00> : vector<128xf32>
      %24 = vector.multi_reduction <add>, %23, %cst_19 [0] : vector<128x128xf32> to vector<128xf32>
      %25 = vector.shape_cast %24 : vector<128xf32> to vector<1x128xf32>
      %c1 = arith.constant 1 : index
      %c0_20 = arith.constant 0 : index
      %26 = vector.load %arg5[%c1, %c0_20] : memref<8x128xf32, #tpu.memory_space<vmem>>, vector<1x128xf32>
      tpu.vector_store %arg5[%c1, %c0_20], %25 {strides = array<i32>} : memref<8x128xf32, #tpu.memory_space<vmem>>, vector<1x128xf32>,
    } else {
    }
    return
  }
  func.func @transform_0(%arg0: i32, %arg1: i32) -> (i32, i32) {
    %c0_i32 = arith.constant 0 : i32
    return %arg0, %arg1 : i32, i32
  }
  func.func @transform_1(%arg0: i32, %arg1: i32) -> (i32, i32) {
    %c0_i32 = arith.constant 0 : i32
    %c0_i32_0 = arith.constant 0 : i32
    %c0_i32_1 = arith.constant 0 : i32
    return %c0_i32, %c0_i32_0 : i32, i32
  }
  func.func @transform_2(%arg0: i32, %arg1: i32) -> (i32, i32) {
    %c0_i32 = arith.constant 0 : i32
    %c0_i32_0 = arith.constant 0 : i32
    return %arg0, %c0_i32 : i32, i32
  }
  func.func @transform_3(%arg0: i32, %arg1: i32) -> (i32, i32) {
    %c0_i32 = arith.constant 0 : i32
    %c0_i32_0 = arith.constant 0 : i32
    return %arg0, %c0_i32 : i32, i32
  }
}

module attributes {stable_mosaic.version = 11 : i64} {
  func.func @_bn_apply_kernel(%arg0: i32, %arg1: memref<128x128xbf16, #tpu.memory_space<vmem>>, %arg2: memref<1x128xf32, #tpu.memory_space<vmem>>, %arg3: memref<1x128xf32, #tpu.memory_space<vmem>>, %arg4: memref<128x128xf32, #tpu.memory_space<vmem>>) attributes {dimension_semantics = [#tpu.dimension_semantics<parallel>], iteration_bounds = array<i64: 1>, scalar_prefetch = 0 : i64, scratch_operands = 0 : i64, tpu.core_type = #tpu.core_type<tc>, window_params = [{transform_indices = @transform_0, window_bounds = array<i64: 128, 128>}, {pipeline_mode = #tpu.pipeline_mode<synchronous>, transform_indices = @transform_1, window_bounds = array<i64: 1, 128>}, {pipeline_mode = #tpu.pipeline_mode<synchronous>, transform_indices = @transform_2, window_bounds = array<i64: 1, 128>}, {transform_indices = @transform_3, window_bounds = array<i64: 128, 128>}]} {
    %c0 = arith.constant 0 : index
    %c0_0 = arith.constant 0 : index
    %0 = vector.load %arg1[%c0, %c0_0] : memref<128x128xbf16, #tpu.memory_space<vmem>>, vector<128x128xbf16>
    %1 = arith.extf %0 : vector<128x128xbf16> to vector<128x128xf32>
    %c0_1 = arith.constant 0 : index
    %c0_2 = arith.constant 0 : index
    %2 = vector.load %arg2[%c0_1, %c0_2] : memref<1x128xf32, #tpu.memory_space<vmem>>, vector<1x128xf32>
    %3 = vector.broadcast %2 : vector<1x128xf32> to vector<128x128xf32>
    %4 = arith.mulf %1, %3 : vector<128x128xf32>
    %c0_3 = arith.constant 0 : index
    %c0_4 = arith.constant 0 : index
    %5 = vector.load %arg3[%c0_3, %c0_4] : memref<1x128xf32, #tpu.memory_space<vmem>>, vector<1x128xf32>
    %6 = vector.broadcast %5 : vector<1x128xf32> to vector<128x128xf32>
    %7 = arith.addf %4, %6 : vector<128x128xf32>
    %c0_5 = arith.constant 0 : index
    %c0_6 = arith.constant 0 : index
    %8 = vector.load %arg4[%c0_5, %c0_6] : memref<128x128xf32, #tpu.memory_space<vmem>>, vector<128x128xf32>
    tpu.vector_store %arg4[%c0_5, %c0_6], %7 {strides = array<i32>} : memref<128x128xf32, #tpu.memory_space<vmem>>, vector<128x128xf32>,
    return
  }
  func.func @transform_0(%arg0: i32) -> (i32, i32) {
    %c0_i32 = arith.constant 0 : i32
    %c0_i32_0 = arith.constant 0 : i32
    return %arg0, %c0_i32 : i32, i32
  }
  func.func @transform_1(%arg0: i32) -> (i32, i32) {
    %c0_i32 = arith.constant 0 : i32
    %c0_i32_0 = arith.constant 0 : i32
    %c0_i32_1 = arith.constant 0 : i32
    return %c0_i32, %c0_i32_0 : i32, i32
  }
  func.func @transform_2(%arg0: i32) -> (i32, i32) {
    %c0_i32 = arith.constant 0 : i32
    %c0_i32_0 = arith.constant 0 : i32
    %c0_i32_1 = arith.constant 0 : i32
    return %c0_i32, %c0_i32_0 : i32, i32
  }
  func.func @transform_3(%arg0: i32) -> (i32, i32) {
    %c0_i32 = arith.constant 0 : i32
    %c0_i32_0 = arith.constant 0 : i32
    return %arg0, %c0_i32 : i32, i32
  }
}

module attributes {stable_mosaic.version = 11 : i64} {
  func.func @_bn_apply_add_relu_kernel(%arg0: i32, %arg1: memref<128x128xbf16, #tpu.memory_space<vmem>>, %arg2: memref<128x128xf32, #tpu.memory_space<vmem>>, %arg3: memref<1x128xf32, #tpu.memory_space<vmem>>, %arg4: memref<1x128xf32, #tpu.memory_space<vmem>>, %arg5: memref<128x128xf32, #tpu.memory_space<vmem>>) attributes {dimension_semantics = [#tpu.dimension_semantics<parallel>], iteration_bounds = array<i64: 1>, scalar_prefetch = 0 : i64, scratch_operands = 0 : i64, tpu.core_type = #tpu.core_type<tc>, window_params = [{transform_indices = @transform_0, window_bounds = array<i64: 128, 128>}, {transform_indices = @transform_1, window_bounds = array<i64: 128, 128>}, {pipeline_mode = #tpu.pipeline_mode<synchronous>, transform_indices = @transform_2, window_bounds = array<i64: 1, 128>}, {pipeline_mode = #tpu.pipeline_mode<synchronous>, transform_indices = @transform_3, window_bounds = array<i64: 1, 128>}, {transform_indices = @transform_4, window_bounds = array<i64: 128, 128>}]} {
    %c0 = arith.constant 0 : index
    %c0_0 = arith.constant 0 : index
    %0 = vector.load %arg1[%c0, %c0_0] : memref<128x128xbf16, #tpu.memory_space<vmem>>, vector<128x128xbf16>
    %1 = arith.extf %0 : vector<128x128xbf16> to vector<128x128xf32>
    %c0_1 = arith.constant 0 : index
    %c0_2 = arith.constant 0 : index
    %2 = vector.load %arg3[%c0_1, %c0_2] : memref<1x128xf32, #tpu.memory_space<vmem>>, vector<1x128xf32>
    %3 = vector.broadcast %2 : vector<1x128xf32> to vector<128x128xf32>
    %4 = arith.mulf %1, %3 : vector<128x128xf32>
    %c0_3 = arith.constant 0 : index
    %c0_4 = arith.constant 0 : index
    %5 = vector.load %arg4[%c0_3, %c0_4] : memref<1x128xf32, #tpu.memory_space<vmem>>, vector<1x128xf32>
    %6 = vector.broadcast %5 : vector<1x128xf32> to vector<128x128xf32>
    %7 = arith.addf %4, %6 : vector<128x128xf32>
    %c0_5 = arith.constant 0 : index
    %c0_6 = arith.constant 0 : index
    %8 = vector.load %arg2[%c0_5, %c0_6] : memref<128x128xf32, #tpu.memory_space<vmem>>, vector<128x128xf32>
    %9 = arith.addf %7, %8 : vector<128x128xf32>
    %cst = arith.constant 0.000000e+00 : f32
    %10 = vector.broadcast %cst : f32 to vector<128x128xf32>
    %11 = arith.maximumf %9, %10 : vector<128x128xf32>
    %c0_7 = arith.constant 0 : index
    %c0_8 = arith.constant 0 : index
    %12 = vector.load %arg5[%c0_7, %c0_8] : memref<128x128xf32, #tpu.memory_space<vmem>>, vector<128x128xf32>
    tpu.vector_store %arg5[%c0_7, %c0_8], %11 {strides = array<i32>} : memref<128x128xf32, #tpu.memory_space<vmem>>, vector<128x128xf32>,
    return
  }
  func.func @transform_0(%arg0: i32) -> (i32, i32) {
    %c0_i32 = arith.constant 0 : i32
    %c0_i32_0 = arith.constant 0 : i32
    return %arg0, %c0_i32 : i32, i32
  }
  func.func @transform_1(%arg0: i32) -> (i32, i32) {
    %c0_i32 = arith.constant 0 : i32
    %c0_i32_0 = arith.constant 0 : i32
    return %arg0, %c0_i32 : i32, i32
  }
  func.func @transform_2(%arg0: i32) -> (i32, i32) {
    %c0_i32 = arith.constant 0 : i32
    %c0_i32_0 = arith.constant 0 : i32
    %c0_i32_1 = arith.constant 0 : i32
    return %c0_i32, %c0_i32_0 : i32, i32
  }
  func.func @transform_3(%arg0: i32) -> (i32, i32) {
    %c0_i32 = arith.constant 0 : i32
    %c0_i32_0 = arith.constant 0 : i32
    %c0_i32_1 = arith.constant 0 : i32
    return %c0_i32, %c0_i32_0 : i32, i32
  }
  func.func @transform_4(%arg0: i32) -> (i32, i32) {
    %c0_i32 = arith.constant 0 : i32
    %c0_i32_0 = arith.constant 0 : i32
    return %arg0, %c0_i32 : i32, i32
  }
}

</mosaic_0001>

<llo_original>
// kernel: residual_block_forward.7
$region0: #{residual_block_forward.7}
  #allocation0 [shape = 'u32[]', space=smem, size = 0x4, offset = 0x4, fixed_abs, tag = 'smem constant byte address 0x4 - core index']
  #allocation1 [shape = 'u32[144,128]{1,0:T(1,128)}', space=vmem, size = 0x12000, scoped, tag = 'internal scratch']
  %s0 = inlined_call_operand.vmem [shape: bf16[128,128], index: 0, kind: input, shape index: {}]
  %s1 = inlined_call_operand.vmem [shape: f32[1,128], index: 1, kind: input, shape index: {}]
  %s2 = inlined_call_operand.vmem [shape: f32[1,128], index: 2, kind: input, shape index: {}]
  %s3 = inlined_call_operand.vmem [shape: bf16[128,128], index: 3, kind: output, shape index: {}]
  %s4 = sld [smem:[#allocation0]]
  $region22: #{residual_block_forward.7} parent=0
    _
  %s6 = ssub.s32 1, %s4
  %s7 = scalar_select 0, %s6, %s4
  // Predicated region
  $region2: #{residual_block_forward.7} parent=0 // pred_check
    _
  $region3: #{residual_block_forward.7} parent=0 // pred_check_branch
    %9 = sbr.rel (0) target = $region5
  $region4: #{residual_block_forward.7} parent=0 // pred_region
    _
  $region5: #{residual_block_forward.7} parent=0 // pred_fallthru
    _
  // Predicated region
  $region6: #{residual_block_forward.7} parent=0 // pred_check
    _
  $region7: #{residual_block_forward.7} parent=0 // pred_check_branch
    %11 = sbr.rel (0) target = $region9
  $region8: #{residual_block_forward.7} parent=0 // pred_region
    _
  $region9: #{residual_block_forward.7} parent=0 // pred_fallthru
    _
  // Predicated region
  $region10: #{residual_block_forward.7} parent=0 // pred_check
    _
  $region11: #{residual_block_forward.7} parent=0 // pred_check_branch
    %13 = sbr.rel (0) target = $region13
  $region12: #{residual_block_forward.7} parent=0 // pred_region
    _
  $region13: #{residual_block_forward.7} parent=0 // pred_fallthru
    _
  %v14 = vld [vmem:[%s0] sm:$0xf]
  %v15 = vld [vmem:[%s0 + $0x4] sm:$0xf]
  %v16 = vld [vmem:[%s0 + $0x8] sm:$0xf]
  %v17 = vld [vmem:[%s0 + $0xc] sm:$0xf]
  %v18 = vld [vmem:[%s0 + $0x10] sm:$0xf]
  %v19 = vld [vmem:[%s0 + $0x14] sm:$0xf]
  %v20 = vld [vmem:[%s0 + $0x18] sm:$0xf]
  %v21 = vld [vmem:[%s0 + $0x1c] sm:$0xf]
  %v22 = vld [vmem:[%s0 + $0x20] sm:$0xf]
  %v23 = vld [vmem:[%s0 + $0x24] sm:$0xf]
  %v24 = vld [vmem:[%s0 + $0x28] sm:$0xf]
  %v25 = vld [vmem:[%s0 + $0x2c] sm:$0xf]
  %v26 = vld [vmem:[%s0 + $0x30] sm:$0xf]
  %v27 = vld [vmem:[%s0 + $0x34] sm:$0xf]
  %v28 = vld [vmem:[%s0 + $0x38] sm:$0xf]
  %v29 = vld [vmem:[%s0 + $0x3c] sm:$0xf]
  %v30 = vunpack.c.l.bf16 %v14
  %v31 = vunpack.c.l.bf16 %v15
  %v32 = vunpack.c.l.bf16 %v16
  %v33 = vunpack.c.l.bf16 %v17
  %v34 = vunpack.c.l.bf16 %v18
  %v35 = vunpack.c.l.bf16 %v19
  %v36 = vunpack.c.l.bf16 %v20
  %v37 = vunpack.c.l.bf16 %v21
  %v38 = vunpack.c.l.bf16 %v22
  %v39 = vunpack.c.l.bf16 %v23
  %v40 = vunpack.c.l.bf16 %v24
  %v41 = vunpack.c.l.bf16 %v25
  %v42 = vunpack.c.l.bf16 %v26
  %v43 = vunpack.c.l.bf16 %v27
  %v44 = vunpack.c.l.bf16 %v28
  %v45 = vunpack.c.l.bf16 %v29
  %v46 = vld [vmem:[%s1] sm:$0x1]
  %v48 = vlaneseq
  %v49 = vshrl.u32 %v48, 7
  %v50 = vsub.s32 0, %v49
  %v51 = vrot.slane %v46, %v50
  %v53 = vmul.f32 %v30, %v51
  %v54 = vmul.f32 %v31, %v51
  %v55 = vmul.f32 %v32, %v51
  %v56 = vmul.f32 %v33, %v51
  %v57 = vmul.f32 %v34, %v51
  %v58 = vmul.f32 %v35, %v51
  %v59 = vmul.f32 %v36, %v51
  %v60 = vmul.f32 %v37, %v51
  %v61 = vmul.f32 %v38, %v51
  %v62 = vmul.f32 %v39, %v51
  %v63 = vmul.f32 %v40, %v51
  %v64 = vmul.f32 %v41, %v51
  %v65 = vmul.f32 %v42, %v51
  %v66 = vmul.f32 %v43, %v51
  %v67 = vmul.f32 %v44, %v51
  %v68 = vmul.f32 %v45, %v51
  %v69 = vld [vmem:[%s2] sm:$0x1]
  %v71 = vlaneseq
  %v72 = vshrl.u32 %v71, 7
  %v73 = vsub.s32 0, %v72
  %v74 = vrot.slane %v69, %v73
  %v76 = vadd.f32 %v53, %v74
  %v77 = vadd.f32 %v54, %v74
  %v78 = vadd.f32 %v55, %v74
  %v79 = vadd.f32 %v56, %v74
  %v80 = vadd.f32 %v57, %v74
  %v81 = vadd.f32 %v58, %v74
  %v82 = vadd.f32 %v59, %v74
  %v83 = vadd.f32 %v60, %v74
  %v84 = vadd.f32 %v61, %v74
  %v85 = vadd.f32 %v62, %v74
  %v86 = vadd.f32 %v63, %v74
  %v87 = vadd.f32 %v64, %v74
  %v88 = vadd.f32 %v65, %v74
  %v89 = vadd.f32 %v66, %v74
  %v90 = vadd.f32 %v67, %v74
  %v91 = vadd.f32 %v68, %v74
  %v92 = vmax.f32 %v76, 0.0
  %v93 = vmax.f32 %v77, 0.0
  %v94 = vmax.f32 %v78, 0.0
  %v95 = vmax.f32 %v79, 0.0
  %v96 = vmax.f32 %v80, 0.0
  %v97 = vmax.f32 %v81, 0.0
  %v98 = vmax.f32 %v82, 0.0
  %v99 = vmax.f32 %v83, 0.0
  %v100 = vmax.f32 %v84, 0.0
  %v101 = vmax.f32 %v85, 0.0
  %v102 = vmax.f32 %v86, 0.0
  %v103 = vmax.f32 %v87, 0.0
  %v104 = vmax.f32 %v88, 0.0
  %v105 = vmax.f32 %v89, 0.0
  %v106 = vmax.f32 %v90, 0.0
  %v107 = vmax.f32 %v91, 0.0
  %v108 = vpack.c.bf16 %v93, %v92
  %v109 = vpack.c.bf16 %v95, %v94
  %v110 = vpack.c.bf16 %v97, %v96
  %v111 = vpack.c.bf16 %v99, %v98
  %v112 = vpack.c.bf16 %v101, %v100
  %v113 = vpack.c.bf16 %v103, %v102
  %v114 = vpack.c.bf16 %v105, %v104
  %v115 = vpack.c.bf16 %v107, %v106
  %v124 = vunpack.c.l.b16 %v108
  %v125 = vunpack.c.h.b16 %v108
  %v126 = vunpack.c.l.b16 %v109
  %v127 = vunpack.c.h.b16 %v109
  %v128 = vunpack.c.l.b16 %v110
  %v129 = vunpack.c.h.b16 %v110
  %v130 = vunpack.c.l.b16 %v111
  %v131 = vunpack.c.h.b16 %v111
  %v132 = vunpack.c.l.b16 %v112
  %v133 = vunpack.c.h.b16 %v112
  %v134 = vunpack.c.l.b16 %v113
  %v135 = vunpack.c.h.b16 %v113
  %v136 = vunpack.c.l.b16 %v114
  %v137 = vunpack.c.h.b16 %v114
  %v138 = vunpack.c.l.b16 %v115
  %v139 = vunpack.c.h.b16 %v115
  %v140 = vpack.c.b16 %v124, %v124
  %v141 = vpack.c.b16 %v125, %v125
  %v142 = vpack.c.b16 %v126, %v126
  %v143 = vpack.c.b16 %v127, %v127
  %v144 = vpack.c.b16 %v128, %v128
  %v145 = vpack.c.b16 %v129, %v129
  %v146 = vpack.c.b16 %v130, %v130
  %v147 = vpack.c.b16 %v131, %v131
  %v148 = vpack.c.b16 %v132, %v132
  %v149 = vpack.c.b16 %v133, %v133
  %v150 = vpack.c.b16 %v134, %v134
  %v151 = vpack.c.b16 %v135, %v135
  %v152 = vpack.c.b16 %v136, %v136
  %v153 = vpack.c.b16 %v137, %v137
  %v154 = vpack.c.b16 %v138, %v138
  %v155 = vpack.c.b16 %v139, %v139
  %172 = vst [vmem:[%s3] sm:$0xf] %v140
  %173 = vst [vmem:[%s3 + $0x4] sm:$0xf] %v141
  %174 = vst [vmem:[%s3 + $0x8] sm:$0xf] %v142
  %175 = vst [vmem:[%s3 + $0xc] sm:$0xf] %v143
  %176 = vst [vmem:[%s3 + $0x10] sm:$0xf] %v144
  %177 = vst [vmem:[%s3 + $0x14] sm:$0xf] %v145
  %178 = vst [vmem:[%s3 + $0x18] sm:$0xf] %v146
  %179 = vst [vmem:[%s3 + $0x1c] sm:$0xf] %v147
  %180 = vst [vmem:[%s3 + $0x20] sm:$0xf] %v148
  %181 = vst [vmem:[%s3 + $0x24] sm:$0xf] %v149
  %182 = vst [vmem:[%s3 + $0x28] sm:$0xf] %v150
  %183 = vst [vmem:[%s3 + $0x2c] sm:$0xf] %v151
  %184 = vst [vmem:[%s3 + $0x30] sm:$0xf] %v152
  %185 = vst [vmem:[%s3 + $0x34] sm:$0xf] %v153
  %186 = vst [vmem:[%s3 + $0x38] sm:$0xf] %v154
  %187 = vst [vmem:[%s3 + $0x3c] sm:$0xf] %v155
  // Predicated region
  $region14: #{residual_block_forward.7} parent=0 // pred_check
    _
  $region15: #{residual_block_forward.7} parent=0 // pred_check_branch
    %189 = sbr.rel (0) target = $region17
  $region16: #{residual_block_forward.7} parent=0 // pred_region
    _
  $region17: #{residual_block_forward.7} parent=0 // pred_fallthru
    _
  // Predicated region
  $region18: #{residual_block_forward.7} parent=0 // pred_check
    _
  $region19: #{residual_block_forward.7} parent=0 // pred_check_branch
    %191 = sbr.rel (0) target = $region21
  $region20: #{residual_block_forward.7} parent=0 // pred_region
    _
  $region21: #{residual_block_forward.7} parent=0 // pred_fallthru
    _

// kernel: residual_block_forward.6
$region0: #{residual_block_forward.6}
  #allocation0 [shape = 'u32[]', space=smem, size = 0x4, offset = 0x4, fixed_abs, tag = 'smem constant byte address 0x4 - core index']
  #allocation1 [shape = 'u32[144,128]{1,0:T(1,128)}', space=vmem, size = 0x12000, scoped, tag = 'internal scratch']
  #allocation2 [shape = 'f32[128,128]{1,0:T(8,128)}', space=vmem, size = 0x10000, scoped, tag = 'scratch operand']
  %s0 = inlined_call_operand.vmem [shape: bf16[128,128], index: 0, kind: input, shape index: {}]
  %s1 = inlined_call_operand.vmem [shape: bf16[128,128], index: 1, kind: input, shape index: {}]
  %s2 = inlined_call_operand.vmem [shape: bf16[128,128], index: 2, kind: output, shape index: {0}]
  %s3 = inlined_call_operand.vmem [shape: f32[8,128], index: 3, kind: output, shape index: {1}]
  %4 = xla_tuple %s2, %s3
  %s5 = sld [smem:[#allocation0]]
  $region34: #{residual_block_forward.6} parent=0
    _
  %s7 = ssub.s32 1, %s5
  %s8 = scalar_select 0, %s7, %s5
  // Predicated region
  $region2: #{residual_block_forward.6} parent=0 // pred_check
    _
  $region3: #{residual_block_forward.6} parent=0 // pred_check_branch
    %10 = sbr.rel (0) target = $region5
  $region4: #{residual_block_forward.6} parent=0 // pred_region
    _
  $region5: #{residual_block_forward.6} parent=0 // pred_fallthru
    _
  // Predicated region
  $region6: #{residual_block_forward.6} parent=0 // pred_check
    _
  $region7: #{residual_block_forward.6} parent=0 // pred_check_branch
    %12 = sbr.rel (0) target = $region9
  $region8: #{residual_block_forward.6} parent=0 // pred_region
    _
  $region9: #{residual_block_forward.6} parent=0 // pred_fallthru
    _
  %p14 = scmp.eq.s32.totalorder 0, 0
  // Predicated region
  $region10: #{residual_block_forward.6} parent=0 // pred_check
    %p15 = pneg %p14
  $region11: #{residual_block_forward.6} parent=0 // pred_check_branch
    %17 = sbr.rel (%p15) target = $region13
  $region12: #{residual_block_forward.6} parent=0 // pred_region
    %18 = vst [vmem:[#allocation2] sm:$0xff] 0.0
    %19 = vst [vmem:[#allocation2 + $0x8] sm:$0xff] 0.0
    %20 = vst [vmem:[#allocation2 + $0x10] sm:$0xff] 0.0
    %21 = vst [vmem:[#allocation2 + $0x18] sm:$0xff] 0.0
    %22 = vst [vmem:[#allocation2 + $0x20] sm:$0xff] 0.0
    %23 = vst [vmem:[#allocation2 + $0x28] sm:$0xff] 0.0
    %24 = vst [vmem:[#allocation2 + $0x30] sm:$0xff] 0.0
    %25 = vst [vmem:[#allocation2 + $0x38] sm:$0xff] 0.0
    %26 = vst [vmem:[#allocation2 + $0x40] sm:$0xff] 0.0
    %27 = vst [vmem:[#allocation2 + $0x48] sm:$0xff] 0.0
    %28 = vst [vmem:[#allocation2 + $0x50] sm:$0xff] 0.0
    %29 = vst [vmem:[#allocation2 + $0x58] sm:$0xff] 0.0
    %30 = vst [vmem:[#allocation2 + $0x60] sm:$0xff] 0.0
    %31 = vst [vmem:[#allocation2 + $0x68] sm:$0xff] 0.0
    %32 = vst [vmem:[#allocation2 + $0x70] sm:$0xff] 0.0
    %33 = vst [vmem:[#allocation2 + $0x78] sm:$0xff] 0.0
  $region13: #{residual_block_forward.6} parent=0 // pred_fallthru
    _
  %s34 = smul.u32 0, 128
  %v35 = vld [vmem:[#allocation2] sm:$0xff]
  %v36 = vld [vmem:[#allocation2 + $0x8] sm:$0xff]
  %v37 = vld [vmem:[#allocation2 + $0x10] sm:$0xff]
  %v38 = vld [vmem:[#allocation2 + $0x18] sm:$0xff]
  %v39 = vld [vmem:[#allocation2 + $0x20] sm:$0xff]
  %v40 = vld [vmem:[#allocation2 + $0x28] sm:$0xff]
  %v41 = vld [vmem:[#allocation2 + $0x30] sm:$0xff]
  %v42 = vld [vmem:[#allocation2 + $0x38] sm:$0xff]
  %v43 = vld [vmem:[#allocation2 + $0x40] sm:$0xff]
  %v44 = vld [vmem:[#allocation2 + $0x48] sm:$0xff]
  %v45 = vld [vmem:[#allocation2 + $0x50] sm:$0xff]
  %v46 = vld [vmem:[#allocation2 + $0x58] sm:$0xff]
  %v47 = vld [vmem:[#allocation2 + $0x60] sm:$0xff]
  %v48 = vld [vmem:[#allocation2 + $0x68] sm:$0xff]
  %v49 = vld [vmem:[#allocation2 + $0x70] sm:$0xff]
  %v50 = vld [vmem:[#allocation2 + $0x78] sm:$0xff]
  %v51 = vld [vmem:[%s0] sm:$0xf]
  %v52 = vld [vmem:[%s0 + $0x4] sm:$0xf]
  %v53 = vld [vmem:[%s0 + $0x8] sm:$0xf]
  %v54 = vld [vmem:[%s0 + $0xc] sm:$0xf]
  %v55 = vld [vmem:[%s0 + $0x10] sm:$0xf]
  %v56 = vld [vmem:[%s0 + $0x14] sm:$0xf]
  %v57 = vld [vmem:[%s0 + $0x18] sm:$0xf]
  %v58 = vld [vmem:[%s0 + $0x1c] sm:$0xf]
  %v59 = vld [vmem:[%s0 + $0x20] sm:$0xf]
  %v60 = vld [vmem:[%s0 + $0x24] sm:$0xf]
  %v61 = vld [vmem:[%s0 + $0x28] sm:$0xf]
  %v62 = vld [vmem:[%s0 + $0x2c] sm:$0xf]
  %v63 = vld [vmem:[%s0 + $0x30] sm:$0xf]
  %v64 = vld [vmem:[%s0 + $0x34] sm:$0xf]
  %v65 = vld [vmem:[%s0 + $0x38] sm:$0xf]
  %v66 = vld [vmem:[%s0 + $0x3c] sm:$0xf]
  %s67 = sshra.s32 %s34, 3
  %s68 = sand.u32 %s34, 7
  %s69 = smul.addr %s67, 4
  %s70 = scalar_lea.vmem %s1, %s69
  %v71 = vld [vmem:[%s70] sm:$0xf]
  %v72 = vld [vmem:[%s70 + $0x4] sm:$0xf]
  %v73 = vld [vmem:[%s70 + $0x8] sm:$0xf]
  %v74 = vld [vmem:[%s70 + $0xc] sm:$0xf]
  %v75 = vld [vmem:[%s70 + $0x10] sm:$0xf]
  %v76 = vld [vmem:[%s70 + $0x14] sm:$0xf]
  %v77 = vld [vmem:[%s70 + $0x18] sm:$0xf]
  %v78 = vld [vmem:[%s70 + $0x1c] sm:$0xf]
  %v79 = vld [vmem:[%s70 + $0x20] sm:$0xf]
  %v80 = vld [vmem:[%s70 + $0x24] sm:$0xf]
  %v81 = vld [vmem:[%s70 + $0x28] sm:$0xf]
  %v82 = vld [vmem:[%s70 + $0x2c] sm:$0xf]
  %v83 = vld [vmem:[%s70 + $0x30] sm:$0xf]
  %v84 = vld [vmem:[%s70 + $0x34] sm:$0xf]
  %v85 = vld [vmem:[%s70 + $0x38] sm:$0xf]
  %v86 = vld [vmem:[%s70 + $0x3c] sm:$0xf]
  %v103 = vunpack.c.l.b16 %v51
  %v104 = vunpack.c.l.b16 %v52
  %v105 = vunpack.c.l.b16 %v53
  %v106 = vunpack.c.l.b16 %v54
  %v107 = vunpack.c.l.b16 %v55
  %v108 = vunpack.c.l.b16 %v56
  %v109 = vunpack.c.l.b16 %v57
  %v110 = vunpack.c.l.b16 %v58
  %v111 = vunpack.c.l.b16 %v59
  %v112 = vunpack.c.l.b16 %v60
  %v113 = vunpack.c.l.b16 %v61
  %v114 = vunpack.c.l.b16 %v62
  %v115 = vunpack.c.l.b16 %v63
  %v116 = vunpack.c.l.b16 %v64
  %v117 = vunpack.c.l.b16 %v65
  %v118 = vunpack.c.l.b16 %v66
  %v119 = vpack.c.b16 %v104, %v103
  %v120 = vpack.c.b16 %v106, %v105
  %v121 = vpack.c.b16 %v108, %v107
  %v122 = vpack.c.b16 %v110, %v109
  %v123 = vpack.c.b16 %v112, %v111
  %v124 = vpack.c.b16 %v114, %v113
  %v125 = vpack.c.b16 %v116, %v115
  %v126 = vpack.c.b16 %v118, %v117
  %v151 = vunpack.c.l.b16 %v71
  %v152 = vunpack.c.l.b16 %v72
  %v153 = vunpack.c.l.b16 %v73
  %v154 = vunpack.c.l.b16 %v74
  %v155 = vunpack.c.l.b16 %v75
  %v156 = vunpack.c.l.b16 %v76
  %v157 = vunpack.c.l.b16 %v77
  %v158 = vunpack.c.l.b16 %v78
  %v159 = vunpack.c.l.b16 %v79
  %v160 = vunpack.c.l.b16 %v80
  %v161 = vunpack.c.l.b16 %v81
  %v162 = vunpack.c.l.b16 %v82
  %v163 = vunpack.c.l.b16 %v83
  %v164 = vunpack.c.l.b16 %v84
  %v165 = vunpack.c.l.b16 %v85
  %v166 = vunpack.c.l.b16 %v86
  %v167 = vpack.c.b16 %v152, %v151
  %v168 = vpack.c.b16 %v154, %v153
  %v169 = vpack.c.b16 %v156, %v155
  %v170 = vpack.c.b16 %v158, %v157
  %v171 = vpack.c.b16 %v160, %v159
  %v172 = vpack.c.b16 %v162, %v161
  %v173 = vpack.c.b16 %v164, %v163
  %v174 = vpack.c.b16 %v166, %v165
  %183 = vmatprep.subr.bf16.mxu0 0
  %184 = vmatpush1.bf16.msra.mxu0 %v167
  %185 = vmatprep.subr.bf16.mxu0 0
  %186 = vmatpush1.bf16.msra.mxu0 %v168
  %187 = vmatprep.subr.bf16.mxu0 0
  %188 = vmatpush1.bf16.msra.mxu0 %v169
  %189 = vmatprep.subr.bf16.mxu0 0
  %190 = vmatpush1.bf16.msra.mxu0 %v170
  %191 = vmatprep.subr.bf16.mxu0 0
  %192 = vmatpush1.bf16.msra.mxu0 %v171
  %193 = vmatprep.subr.bf16.mxu0 0
  %194 = vmatpush1.bf16.msra.mxu0 %v172
  %195 = vmatprep.subr.bf16.mxu0 0
  %196 = vmatpush1.bf16.msra.mxu0 %v173
  %197 = vmatprep.subr.bf16.mxu0 0
  %198 = vmatpush1.bf16.msra.mxu0 %v174
  %199 = vmatprep.subr.bf16.mxu0 0
  %200 = vmatpush1.bf16.msra.mxu0 0
  %201 = vmatprep.subr.bf16.mxu0 0
  %202 = vmatpush1.bf16.msra.mxu0 0
  %203 = vmatprep.subr.bf16.mxu0 0
  %204 = vmatpush1.bf16.msra.mxu0 0
  %205 = vmatprep.subr.bf16.mxu0 0
  %206 = vmatpush1.bf16.msra.mxu0 0
  %207 = vmatprep.subr.bf16.mxu0 0
  %208 = vmatpush1.bf16.msra.mxu0 0
  %209 = vmatprep.subr.bf16.mxu0 0
  %210 = vmatpush1.bf16.msra.mxu0 0
  %211 = vmatprep.subr.bf16.mxu0 0
  %212 = vmatpush1.bf16.msra.mxu0 0
  %213 = vmatprep.subr.bf16.mxu0 0
  %214 = vmatpush1.bf16.msra.mxu0 0
  %215 = vmatprep.mubr.bf16.mxu0 0
  %216 = vmatmul.mubr.bf16.gmra.mrb[0].mxu0 %v119
  %v217 = vpop.f32.mrb[0].mxu0
  %v218 = vadd.f32 0.0, %v217
  %v219 = vpop.f32.mrb[0].mxu0
  %v220 = vpop.f32.mrb[0].mxu0
  %v221 = vadd.f32 0.0, %v220
  %v222 = vpop.f32.mrb[0].mxu0
  %223 = vmatprep.mubr.bf16.mxu0 0
  %224 = vmatmul.mubr.bf16.gmra.mrb[0].mxu0 %v120
  %v225 = vpop.f32.mrb[0].mxu0
  %v226 = vadd.f32 0.0, %v225
  %v227 = vpop.f32.mrb[0].mxu0
  %v228 = vpop.f32.mrb[0].mxu0
  %v229 = vadd.f32 0.0, %v228
  %v230 = vpop.f32.mrb[0].mxu0
  %231 = vmatprep.mubr.bf16.mxu0 0
  %232 = vmatmul.mubr.bf16.gmra.mrb[0].mxu0 %v121
  %v233 = vpop.f32.mrb[0].mxu0
  %v234 = vadd.f32 0.0, %v233
  %v235 = vpop.f32.mrb[0].mxu0
  %v236 = vpop.f32.mrb[0].mxu0
  %v237 = vadd.f32 0.0, %v236
  %v238 = vpop.f32.mrb[0].mxu0
  %239 = vmatprep.mubr.bf16.mxu0 0
  %240 = vmatmul.mubr.bf16.gmra.mrb[0].mxu0 %v122
  %v241 = vpop.f32.mrb[0].mxu0
  %v242 = vadd.f32 0.0, %v241
  %v243 = vpop.f32.mrb[0].mxu0
  %v244 = vpop.f32.mrb[0].mxu0
  %v245 = vadd.f32 0.0, %v244
  %v246 = vpop.f32.mrb[0].mxu0
  %247 = vmatprep.mubr.bf16.mxu0 0
  %248 = vmatmul.mubr.bf16.gmra.mrb[0].mxu0 %v123
  %v249 = vpop.f32.mrb[0].mxu0
  %v250 = vadd.f32 0.0, %v249
  %v251 = vpop.f32.mrb[0].mxu0
  %v252 = vpop.f32.mrb[0].mxu0
  %v253 = vadd.f32 0.0, %v252
  %v254 = vpop.f32.mrb[0].mxu0
  %255 = vmatprep.mubr.bf16.mxu0 0
  %256 = vmatmul.mubr.bf16.gmra.mrb[0].mxu0 %v124
  %v257 = vpop.f32.mrb[0].mxu0
  %v258 = vadd.f32 0.0, %v257
  %v259 = vpop.f32.mrb[0].mxu0
  %v260 = vpop.f32.mrb[0].mxu0
  %v261 = vadd.f32 0.0, %v260
  %v262 = vpop.f32.mrb[0].mxu0
  %263 = vmatprep.mubr.bf16.mxu0 0
  %264 = vmatmul.mubr.bf16.gmra.mrb[0].mxu0 %v125
  %v265 = vpop.f32.mrb[0].mxu0
  %v266 = vadd.f32 0.0, %v265
  %v267 = vpop.f32.mrb[0].mxu0
  %v268 = vpop.f32.mrb[0].mxu0
  %v269 = vadd.f32 0.0, %v268
  %v270 = vpop.f32.mrb[0].mxu0
  %271 = vmatprep.mubr.bf16.mxu0 0
  %272 = vmatmul.mubr.bf16.gmra.mrb[0].mxu0 %v126
  %v273 = vpop.f32.mrb[0].mxu0
  %v274 = vadd.f32 0.0, %v273
  %v275 = vpop.f32.mrb[0].mxu0
  %v276 = vpop.f32.mrb[0].mxu0
  %v277 = vadd.f32 0.0, %v276
  %v278 = vpop.f32.mrb[0].mxu0
  %279 = vdwg.mxu0
  %v280 = vadd.f32 %v35, %v218
  %v281 = vadd.f32 %v36, %v221
  %v282 = vadd.f32 %v37, %v226
  %v283 = vadd.f32 %v38, %v229
  %v284 = vadd.f32 %v39, %v234
  %v285 = vadd.f32 %v40, %v237
  %v286 = vadd.f32 %v41, %v242
  %v287 = vadd.f32 %v42, %v245
  %v288 = vadd.f32 %v43, %v250
  %v289 = vadd.f32 %v44, %v253
  %v290 = vadd.f32 %v45, %v258
  %v291 = vadd.f32 %v46, %v261
  %v292 = vadd.f32 %v47, %v266
  %v293 = vadd.f32 %v48, %v269
  %v294 = vadd.f32 %v49, %v274
  %v295 = vadd.f32 %v50, %v277
  %296 = vst [vmem:[#allocation2] sm:$0xff] %v280
  %297 = vst [vmem:[#allocation2 + $0x8] sm:$0xff] %v281
  %298 = vst [vmem:[#allocation2 + $0x10] sm:$0xff] %v282
  %299 = vst [vmem:[#allocation2 + $0x18] sm:$0xff] %v283
  %300 = vst [vmem:[#allocation2 + $0x20] sm:$0xff] %v284
  %301 = vst [vmem:[#allocation2 + $0x28] sm:$0xff] %v285
  %302 = vst [vmem:[#allocation2 + $0x30] sm:$0xff] %v286
  %303 = vst [vmem:[#allocation2 + $0x38] sm:$0xff] %v287
  %304 = vst [vmem:[#allocation2 + $0x40] sm:$0xff] %v288
  %305 = vst [vmem:[#allocation2 + $0x48] sm:$0xff] %v289
  %306 = vst [vmem:[#allocation2 + $0x50] sm:$0xff] %v290
  %307 = vst [vmem:[#allocation2 + $0x58] sm:$0xff] %v291
  %308 = vst [vmem:[#allocation2 + $0x60] sm:$0xff] %v292
  %309 = vst [vmem:[#allocation2 + $0x68] sm:$0xff] %v293
  %310 = vst [vmem:[#allocation2 + $0x70] sm:$0xff] %v294
  %311 = vst [vmem:[#allocation2 + $0x78] sm:$0xff] %v295
  // Predicated region
  $region14: #{residual_block_forward.6} parent=0 // pred_check
    %p312 = pneg %p14
  $region15: #{residual_block_forward.6} parent=0 // pred_check_branch
    %314 = sbr.rel (%p312) target = $region17
  $region16: #{residual_block_forward.6} parent=0 // pred_region
    %v315 = vld [vmem:[#allocation2] sm:$0xff]
    %v316 = vld [vmem:[#allocation2 + $0x8] sm:$0xff]
    %v317 = vld [vmem:[#allocation2 + $0x10] sm:$0xff]
    %v318 = vld [vmem:[#allocation2 + $0x18] sm:$0xff]
    %v319 = vld [vmem:[#allocation2 + $0x20] sm:$0xff]
    %v320 = vld [vmem:[#allocation2 + $0x28] sm:$0xff]
    %v321 = vld [vmem:[#allocation2 + $0x30] sm:$0xff]
    %v322 = vld [vmem:[#allocation2 + $0x38] sm:$0xff]
    %v323 = vld [vmem:[#allocation2 + $0x40] sm:$0xff]
    %v324 = vld [vmem:[#allocation2 + $0x48] sm:$0xff]
    %v325 = vld [vmem:[#allocation2 + $0x50] sm:$0xff]
    %v326 = vld [vmem:[#allocation2 + $0x58] sm:$0xff]
    %v327 = vld [vmem:[#allocation2 + $0x60] sm:$0xff]
    %v328 = vld [vmem:[#allocation2 + $0x68] sm:$0xff]
    %v329 = vld [vmem:[#allocation2 + $0x70] sm:$0xff]
    %v330 = vld [vmem:[#allocation2 + $0x78] sm:$0xff]
    %v331 = vpack.c.bf16 %v316, %v315
    %v332 = vpack.c.bf16 %v318, %v317
    %v333 = vpack.c.bf16 %v320, %v319
    %v334 = vpack.c.bf16 %v322, %v321
    %v335 = vpack.c.bf16 %v324, %v323
    %v336 = vpack.c.bf16 %v326, %v325
    %v337 = vpack.c.bf16 %v328, %v327
    %v338 = vpack.c.bf16 %v330, %v329
    %v347 = vunpack.c.l.b16 %v331
    %v348 = vunpack.c.h.b16 %v331
    %v349 = vunpack.c.l.b16 %v332
    %v350 = vunpack.c.h.b16 %v332
    %v351 = vunpack.c.l.b16 %v333
    %v352 = vunpack.c.h.b16 %v333
    %v353 = vunpack.c.l.b16 %v334
    %v354 = vunpack.c.h.b16 %v334
    %v355 = vunpack.c.l.b16 %v335
    %v356 = vunpack.c.h.b16 %v335
    %v357 = vunpack.c.l.b16 %v336
    %v358 = vunpack.c.h.b16 %v336
    %v359 = vunpack.c.l.b16 %v337
    %v360 = vunpack.c.h.b16 %v337
    %v361 = vunpack.c.l.b16 %v338
    %v362 = vunpack.c.h.b16 %v338
    %v363 = vpack.c.b16 %v347, %v347
    %v364 = vpack.c.b16 %v348, %v348
    %v365 = vpack.c.b16 %v349, %v349
    %v366 = vpack.c.b16 %v350, %v350
    %v367 = vpack.c.b16 %v351, %v351
    %v368 = vpack.c.b16 %v352, %v352
    %v369 = vpack.c.b16 %v353, %v353
    %v370 = vpack.c.b16 %v354, %v354
    %v371 = vpack.c.b16 %v355, %v355
    %v372 = vpack.c.b16 %v356, %v356
    %v373 = vpack.c.b16 %v357, %v357
    %v374 = vpack.c.b16 %v358, %v358
    %v375 = vpack.c.b16 %v359, %v359
    %v376 = vpack.c.b16 %v360, %v360
    %v377 = vpack.c.b16 %v361, %v361
    %v378 = vpack.c.b16 %v362, %v362
    %395 = vst [vmem:[%s2] sm:$0xf] %v363
    %396 = vst [vmem:[%s2 + $0x4] sm:$0xf] %v364
    %397 = vst [vmem:[%s2 + $0x8] sm:$0xf] %v365
    %398 = vst [vmem:[%s2 + $0xc] sm:$0xf] %v366
    %399 = vst [vmem:[%s2 + $0x10] sm:$0xf] %v367
    %400 = vst [vmem:[%s2 + $0x14] sm:$0xf] %v368
    %401 = vst [vmem:[%s2 + $0x18] sm:$0xf] %v369
    %402 = vst [vmem:[%s2 + $0x1c] sm:$0xf] %v370
    %403 = vst [vmem:[%s2 + $0x20] sm:$0xf] %v371
    %404 = vst [vmem:[%s2 + $0x24] sm:$0xf] %v372
    %405 = vst [vmem:[%s2 + $0x28] sm:$0xf] %v373
    %406 = vst [vmem:[%s2 + $0x2c] sm:$0xf] %v374
    %407 = vst [vmem:[%s2 + $0x30] sm:$0xf] %v375
    %408 = vst [vmem:[%s2 + $0x34] sm:$0xf] %v376
    %409 = vst [vmem:[%s2 + $0x38] sm:$0xf] %v377
    %410 = vst [vmem:[%s2 + $0x3c] sm:$0xf] %v378
    %411 = vst [vmem:[%s3] sm:$0xff] 0.0
    %v412 = vadd.f32 %v315, %v316
    %v413 = vadd.f32 %v412, %v317
    %v414 = vadd.f32 %v413, %v318
    %v415 = vadd.f32 %v414, %v319
    %v416 = vadd.f32 %v415, %v320
    %v417 = vadd.f32 %v416, %v321
    %v418 = vadd.f32 %v417, %v322
    %v419 = vadd.f32 %v418, %v323
    %v420 = vadd.f32 %v419, %v324
    %v421 = vadd.f32 %v420, %v325
    %v422 = vadd.f32 %v421, %v326
    %v423 = vadd.f32 %v422, %v327
    %v424 = vadd.f32 %v423, %v328
    %v425 = vadd.f32 %v424, %v329
    %v426 = vadd.f32 %v425, %v330
    %v427 = vrot.slane %v426, 4
    %v428 = vadd.f32 %v426, %v427
    %v429 = vrot.slane %v428, 2
    %v430 = vadd.f32 %v428, %v429
    %v431 = vrot.slane %v430, 1
    %v432 = vadd.f32 %v430, %v431
    %433 = vst [vmem:[%s3] sm:$0x1] %v432
    %v434 = vmul.f32 %v315, %v315
    %v435 = vmul.f32 %v316, %v316
    %v436 = vmul.f32 %v317, %v317
    %v437 = vmul.f32 %v318, %v318
    %v438 = vmul.f32 %v319, %v319
    %v439 = vmul.f32 %v320, %v320
    %v440 = vmul.f32 %v321, %v321
    %v441 = vmul.f32 %v322, %v322
    %v442 = vmul.f32 %v323, %v323
    %v443 = vmul.f32 %v324, %v324
    %v444 = vmul.f32 %v325, %v325
    %v445 = vmul.f32 %v326, %v326
    %v446 = vmul.f32 %v327, %v327
    %v447 = vmul.f32 %v328, %v328
    %v448 = vmul.f32 %v329, %v329
    %v449 = vmul.f32 %v330, %v330
    %v450 = vadd.f32 %v434, %v435
    %v451 = vadd.f32 %v450, %v436
    %v452 = vadd.f32 %v451, %v437
    %v453 = vadd.f32 %v452, %v438
    %v454 = vadd.f32 %v453, %v439
    %v455 = vadd.f32 %v454, %v440
    %v456 = vadd.f32 %v455, %v441
    %v457 = vadd.f32 %v456, %v442
    %v458 = vadd.f32 %v457, %v443
    %v459 = vadd.f32 %v458, %v444
    %v460 = vadd.f32 %v459, %v445
    %v461 = vadd.f32 %v460, %v446
    %v462 = vadd.f32 %v461, %v447
    %v463 = vadd.f32 %v462, %v448
    %v464 = vadd.f32 %v463, %v449
    %v465 = vrot.slane %v464, 4
    %v466 = vadd.f32 %v464, %v465
    %v467 = vrot.slane %v466, 2
    %v468 = vadd.f32 %v466, %v467
    %v469 = vrot.slane %v468, 1
    %v470 = vadd.f32 %v468, %v469
    %471 = vst [vmem:[%s3 + $0x1] sm:$0x1] %v470
  $region17: #{residual_block_forward.6} parent=0 // pred_fallthru
    _
  // Predicated region
  $region18: #{residual_block_forward.6} parent=0 // pred_check
    _
  $region19: #{residual_block_forward.6} parent=0 // pred_check_branch
    %473 = sbr.rel (0) target = $region21
  $region20: #{residual_block_forward.6} parent=0 // pred_region
    _
  $region21: #{residual_block_forward.6} parent=0 // pred_fallthru
    _
  // Predicated region
  $region22: #{residual_block_forward.6} parent=0 // pred_check
    _
  $region23: #{residual_block_forward.6} parent=0 // pred_check_branch
    %475 = sbr.rel (0) target = $region25
  $region24: #{residual_block_forward.6} parent=0 // pred_region
    _
  $region25: #{residual_block_forward.6} parent=0 // pred_fallthru
    _
  // Predicated region
  $region26: #{residual_block_forward.6} parent=0 // pred_check
    _
  $region27: #{residual_block_forward.6} parent=0 // pred_check_branch
    %477 = sbr.rel (0) target = $region29
  $region28: #{residual_block_forward.6} parent=0 // pred_region
    _
  $region29: #{residual_block_forward.6} parent=0 // pred_fallthru
    _
  // Predicated region
  $region30: #{residual_block_forward.6} parent=0 // pred_check
    _
  $region31: #{residual_block_forward.6} parent=0 // pred_check_branch
    %479 = sbr.rel (0) target = $region33
  $region32: #{residual_block_forward.6} parent=0 // pred_region
    _
  $region33: #{residual_block_forward.6} parent=0 // pred_fallthru
    _

// kernel: residual_block_forward.10
$region0: #{residual_block_forward.10}
  #allocation0 [shape = 'u32[]', space=smem, size = 0x4, offset = 0x4, fixed_abs, tag = 'smem constant byte address 0x4 - core index']
  #allocation1 [shape = 'u32[144,128]{1,0:T(1,128)}', space=vmem, size = 0x12000, scoped, tag = 'internal scratch']
  %s0 = inlined_call_operand.vmem [shape: bf16[128,128], index: 0, kind: input, shape index: {}]
  %s1 = inlined_call_operand.vmem [shape: f32[1,128], index: 1, kind: input, shape index: {}]
  %s2 = inlined_call_operand.vmem [shape: f32[1,128], index: 2, kind: input, shape index: {}]
  %s3 = inlined_call_operand.vmem [shape: f32[128,128], index: 3, kind: output, shape index: {}]
  %s4 = sld [smem:[#allocation0]]
  $region22: #{residual_block_forward.10} parent=0
    _
  %s6 = ssub.s32 1, %s4
  %s7 = scalar_select 0, %s6, %s4
  // Predicated region
  $region2: #{residual_block_forward.10} parent=0 // pred_check
    _
  $region3: #{residual_block_forward.10} parent=0 // pred_check_branch
    %9 = sbr.rel (0) target = $region5
  $region4: #{residual_block_forward.10} parent=0 // pred_region
    _
  $region5: #{residual_block_forward.10} parent=0 // pred_fallthru
    _
  // Predicated region
  $region6: #{residual_block_forward.10} parent=0 // pred_check
    _
  $region7: #{residual_block_forward.10} parent=0 // pred_check_branch
    %11 = sbr.rel (0) target = $region9
  $region8: #{residual_block_forward.10} parent=0 // pred_region
    _
  $region9: #{residual_block_forward.10} parent=0 // pred_fallthru
    _
  // Predicated region
  $region10: #{residual_block_forward.10} parent=0 // pred_check
    _
  $region11: #{residual_block_forward.10} parent=0 // pred_check_branch
    %13 = sbr.rel (0) target = $region13
  $region12: #{residual_block_forward.10} parent=0 // pred_region
    _
  $region13: #{residual_block_forward.10} parent=0 // pred_fallthru
    _
  %v14 = vld [vmem:[%s0] sm:$0xf]
  %v15 = vld [vmem:[%s0 + $0x4] sm:$0xf]
  %v16 = vld [vmem:[%s0 + $0x8] sm:$0xf]
  %v17 = vld [vmem:[%s0 + $0xc] sm:$0xf]
  %v18 = vld [vmem:[%s0 + $0x10] sm:$0xf]
  %v19 = vld [vmem:[%s0 + $0x14] sm:$0xf]
  %v20 = vld [vmem:[%s0 + $0x18] sm:$0xf]
  %v21 = vld [vmem:[%s0 + $0x1c] sm:$0xf]
  %v22 = vld [vmem:[%s0 + $0x20] sm:$0xf]
  %v23 = vld [vmem:[%s0 + $0x24] sm:$0xf]
  %v24 = vld [vmem:[%s0 + $0x28] sm:$0xf]
  %v25 = vld [vmem:[%s0 + $0x2c] sm:$0xf]
  %v26 = vld [vmem:[%s0 + $0x30] sm:$0xf]
  %v27 = vld [vmem:[%s0 + $0x34] sm:$0xf]
  %v28 = vld [vmem:[%s0 + $0x38] sm:$0xf]
  %v29 = vld [vmem:[%s0 + $0x3c] sm:$0xf]
  %v30 = vunpack.c.l.bf16 %v14
  %v31 = vunpack.c.l.bf16 %v15
  %v32 = vunpack.c.l.bf16 %v16
  %v33 = vunpack.c.l.bf16 %v17
  %v34 = vunpack.c.l.bf16 %v18
  %v35 = vunpack.c.l.bf16 %v19
  %v36 = vunpack.c.l.bf16 %v20
  %v37 = vunpack.c.l.bf16 %v21
  %v38 = vunpack.c.l.bf16 %v22
  %v39 = vunpack.c.l.bf16 %v23
  %v40 = vunpack.c.l.bf16 %v24
  %v41 = vunpack.c.l.bf16 %v25
  %v42 = vunpack.c.l.bf16 %v26
  %v43 = vunpack.c.l.bf16 %v27
  %v44 = vunpack.c.l.bf16 %v28
  %v45 = vunpack.c.l.bf16 %v29
  %v46 = vld [vmem:[%s1] sm:$0x1]
  %v48 = vlaneseq
  %v49 = vshrl.u32 %v48, 7
  %v50 = vsub.s32 0, %v49
  %v51 = vrot.slane %v46, %v50
  %v53 = vmul.f32 %v30, %v51
  %v54 = vmul.f32 %v31, %v51
  %v55 = vmul.f32 %v32, %v51
  %v56 = vmul.f32 %v33, %v51
  %v57 = vmul.f32 %v34, %v51
  %v58 = vmul.f32 %v35, %v51
  %v59 = vmul.f32 %v36, %v51
  %v60 = vmul.f32 %v37, %v51
  %v61 = vmul.f32 %v38, %v51
  %v62 = vmul.f32 %v39, %v51
  %v63 = vmul.f32 %v40, %v51
  %v64 = vmul.f32 %v41, %v51
  %v65 = vmul.f32 %v42, %v51
  %v66 = vmul.f32 %v43, %v51
  %v67 = vmul.f32 %v44, %v51
  %v68 = vmul.f32 %v45, %v51
  %v69 = vld [vmem:[%s2] sm:$0x1]
  %v71 = vlaneseq
  %v72 = vshrl.u32 %v71, 7
  %v73 = vsub.s32 0, %v72
  %v74 = vrot.slane %v69, %v73
  %v76 = vadd.f32 %v53, %v74
  %v77 = vadd.f32 %v54, %v74
  %v78 = vadd.f32 %v55, %v74
  %v79 = vadd.f32 %v56, %v74
  %v80 = vadd.f32 %v57, %v74
  %v81 = vadd.f32 %v58, %v74
  %v82 = vadd.f32 %v59, %v74
  %v83 = vadd.f32 %v60, %v74
  %v84 = vadd.f32 %v61, %v74
  %v85 = vadd.f32 %v62, %v74
  %v86 = vadd.f32 %v63, %v74
  %v87 = vadd.f32 %v64, %v74
  %v88 = vadd.f32 %v65, %v74
  %v89 = vadd.f32 %v66, %v74
  %v90 = vadd.f32 %v67, %v74
  %v91 = vadd.f32 %v68, %v74
  %92 = vst [vmem:[%s3] sm:$0xff] %v76
  %93 = vst [vmem:[%s3 + $0x8] sm:$0xff] %v77
  %94 = vst [vmem:[%s3 + $0x10] sm:$0xff] %v78
  %95 = vst [vmem:[%s3 + $0x18] sm:$0xff] %v79
  %96 = vst [vmem:[%s3 + $0x20] sm:$0xff] %v80
  %97 = vst [vmem:[%s3 + $0x28] sm:$0xff] %v81
  %98 = vst [vmem:[%s3 + $0x30] sm:$0xff] %v82
  %99 = vst [vmem:[%s3 + $0x38] sm:$0xff] %v83
  %100 = vst [vmem:[%s3 + $0x40] sm:$0xff] %v84
  %101 = vst [vmem:[%s3 + $0x48] sm:$0xff] %v85
  %102 = vst [vmem:[%s3 + $0x50] sm:$0xff] %v86
  %103 = vst [vmem:[%s3 + $0x58] sm:$0xff] %v87
  %104 = vst [vmem:[%s3 + $0x60] sm:$0xff] %v88
  %105 = vst [vmem:[%s3 + $0x68] sm:$0xff] %v89
  %106 = vst [vmem:[%s3 + $0x70] sm:$0xff] %v90
  %107 = vst [vmem:[%s3 + $0x78] sm:$0xff] %v91
  // Predicated region
  $region14: #{residual_block_forward.10} parent=0 // pred_check
    _
  $region15: #{residual_block_forward.10} parent=0 // pred_check_branch
    %109 = sbr.rel (0) target = $region17
  $region16: #{residual_block_forward.10} parent=0 // pred_region
    _
  $region17: #{residual_block_forward.10} parent=0 // pred_fallthru
    _
  // Predicated region
  $region18: #{residual_block_forward.10} parent=0 // pred_check
    _
  $region19: #{residual_block_forward.10} parent=0 // pred_check_branch
    %111 = sbr.rel (0) target = $region21
  $region20: #{residual_block_forward.10} parent=0 // pred_region
    _
  $region21: #{residual_block_forward.10} parent=0 // pred_fallthru
    _

// kernel: residual_block_forward.11
$region0: #{residual_block_forward.11}
  #allocation0 [shape = 'u32[]', space=smem, size = 0x4, offset = 0x4, fixed_abs, tag = 'smem constant byte address 0x4 - core index']
  #allocation1 [shape = 'u32[144,128]{1,0:T(1,128)}', space=vmem, size = 0x12000, scoped, tag = 'internal scratch']
  %s0 = inlined_call_operand.vmem [shape: bf16[128,128], index: 0, kind: input, shape index: {}]
  %s1 = inlined_call_operand.vmem [shape: f32[128,128], index: 1, kind: input, shape index: {}]
  %s2 = inlined_call_operand.vmem [shape: f32[1,128], index: 2, kind: input, shape index: {}]
  %s3 = inlined_call_operand.vmem [shape: f32[1,128], index: 3, kind: input, shape index: {}]
  %s4 = inlined_call_operand.vmem [shape: f32[128,128], index: 4, kind: output, shape index: {}]
  %s5 = sld [smem:[#allocation0]]
  $region26: #{residual_block_forward.11} parent=0
    _
  %s7 = ssub.s32 1, %s5
  %s8 = scalar_select 0, %s7, %s5
  // Predicated region
  $region2: #{residual_block_forward.11} parent=0 // pred_check
    _
  $region3: #{residual_block_forward.11} parent=0 // pred_check_branch
    %10 = sbr.rel (0) target = $region5
  $region4: #{residual_block_forward.11} parent=0 // pred_region
    _
  $region5: #{residual_block_forward.11} parent=0 // pred_fallthru
    _
  // Predicated region
  $region6: #{residual_block_forward.11} parent=0 // pred_check
    _
  $region7: #{residual_block_forward.11} parent=0 // pred_check_branch
    %12 = sbr.rel (0) target = $region9
  $region8: #{residual_block_forward.11} parent=0 // pred_region
    _
  $region9: #{residual_block_forward.11} parent=0 // pred_fallthru
    _
  // Predicated region
  $region10: #{residual_block_forward.11} parent=0 // pred_check
    _
  $region11: #{residual_block_forward.11} parent=0 // pred_check_branch
    %14 = sbr.rel (0) target = $region13
  $region12: #{residual_block_forward.11} parent=0 // pred_region
    _
  $region13: #{residual_block_forward.11} parent=0 // pred_fallthru
    _
  // Predicated region
  $region14: #{residual_block_forward.11} parent=0 // pred_check
    _
  $region15: #{residual_block_forward.11} parent=0 // pred_check_branch
    %16 = sbr.rel (0) target = $region17
  $region16: #{residual_block_forward.11} parent=0 // pred_region
    _
  $region17: #{residual_block_forward.11} parent=0 // pred_fallthru
    _
  %v17 = vld [vmem:[%s0] sm:$0xf]
  %v18 = vld [vmem:[%s0 + $0x4] sm:$0xf]
  %v19 = vld [vmem:[%s0 + $0x8] sm:$0xf]
  %v20 = vld [vmem:[%s0 + $0xc] sm:$0xf]
  %v21 = vld [vmem:[%s0 + $0x10] sm:$0xf]
  %v22 = vld [vmem:[%s0 + $0x14] sm:$0xf]
  %v23 = vld [vmem:[%s0 + $0x18] sm:$0xf]
  %v24 = vld [vmem:[%s0 + $0x1c] sm:$0xf]
  %v25 = vld [vmem:[%s0 + $0x20] sm:$0xf]
  %v26 = vld [vmem:[%s0 + $0x24] sm:$0xf]
  %v27 = vld [vmem:[%s0 + $0x28] sm:$0xf]
  %v28 = vld [vmem:[%s0 + $0x2c] sm:$0xf]
  %v29 = vld [vmem:[%s0 + $0x30] sm:$0xf]
  %v30 = vld [vmem:[%s0 + $0x34] sm:$0xf]
  %v31 = vld [vmem:[%s0 + $0x38] sm:$0xf]
  %v32 = vld [vmem:[%s0 + $0x3c] sm:$0xf]
  %v33 = vunpack.c.l.bf16 %v17
  %v34 = vunpack.c.l.bf16 %v18
  %v35 = vunpack.c.l.bf16 %v19
  %v36 = vunpack.c.l.bf16 %v20
  %v37 = vunpack.c.l.bf16 %v21
  %v38 = vunpack.c.l.bf16 %v22
  %v39 = vunpack.c.l.bf16 %v23
  %v40 = vunpack.c.l.bf16 %v24
  %v41 = vunpack.c.l.bf16 %v25
  %v42 = vunpack.c.l.bf16 %v26
  %v43 = vunpack.c.l.bf16 %v27
  %v44 = vunpack.c.l.bf16 %v28
  %v45 = vunpack.c.l.bf16 %v29
  %v46 = vunpack.c.l.bf16 %v30
  %v47 = vunpack.c.l.bf16 %v31
  %v48 = vunpack.c.l.bf16 %v32
  %v49 = vld [vmem:[%s2] sm:$0x1]
  %v51 = vlaneseq
  %v52 = vshrl.u32 %v51, 7
  %v53 = vsub.s32 0, %v52
  %v54 = vrot.slane %v49, %v53
  %v56 = vmul.f32 %v33, %v54
  %v57 = vmul.f32 %v34, %v54
  %v58 = vmul.f32 %v35, %v54
  %v59 = vmul.f32 %v36, %v54
  %v60 = vmul.f32 %v37, %v54
  %v61 = vmul.f32 %v38, %v54
  %v62 = vmul.f32 %v39, %v54
  %v63 = vmul.f32 %v40, %v54
  %v64 = vmul.f32 %v41, %v54
  %v65 = vmul.f32 %v42, %v54
  %v66 = vmul.f32 %v43, %v54
  %v67 = vmul.f32 %v44, %v54
  %v68 = vmul.f32 %v45, %v54
  %v69 = vmul.f32 %v46, %v54
  %v70 = vmul.f32 %v47, %v54
  %v71 = vmul.f32 %v48, %v54
  %v72 = vld [vmem:[%s3] sm:$0x1]
  %v74 = vlaneseq
  %v75 = vshrl.u32 %v74, 7
  %v76 = vsub.s32 0, %v75
  %v77 = vrot.slane %v72, %v76
  %v79 = vadd.f32 %v56, %v77
  %v80 = vadd.f32 %v57, %v77
  %v81 = vadd.f32 %v58, %v77
  %v82 = vadd.f32 %v59, %v77
  %v83 = vadd.f32 %v60, %v77
  %v84 = vadd.f32 %v61, %v77
  %v85 = vadd.f32 %v62, %v77
  %v86 = vadd.f32 %v63, %v77
  %v87 = vadd.f32 %v64, %v77
  %v88 = vadd.f32 %v65, %v77
  %v89 = vadd.f32 %v66, %v77
  %v90 = vadd.f32 %v67, %v77
  %v91 = vadd.f32 %v68, %v77
  %v92 = vadd.f32 %v69, %v77
  %v93 = vadd.f32 %v70, %v77
  %v94 = vadd.f32 %v71, %v77
  %v95 = vld [vmem:[%s1] sm:$0xff]
  %v96 = vld [vmem:[%s1 + $0x8] sm:$0xff]
  %v97 = vld [vmem:[%s1 + $0x10] sm:$0xff]
  %v98 = vld [vmem:[%s1 + $0x18] sm:$0xff]
  %v99 = vld [vmem:[%s1 + $0x20] sm:$0xff]
  %v100 = vld [vmem:[%s1 + $0x28] sm:$0xff]
  %v101 = vld [vmem:[%s1 + $0x30] sm:$0xff]
  %v102 = vld [vmem:[%s1 + $0x38] sm:$0xff]
  %v103 = vld [vmem:[%s1 + $0x40] sm:$0xff]
  %v104 = vld [vmem:[%s1 + $0x48] sm:$0xff]
  %v105 = vld [vmem:[%s1 + $0x50] sm:$0xff]
  %v106 = vld [vmem:[%s1 + $0x58] sm:$0xff]
  %v107 = vld [vmem:[%s1 + $0x60] sm:$0xff]
  %v108 = vld [vmem:[%s1 + $0x68] sm:$0xff]
  %v109 = vld [vmem:[%s1 + $0x70] sm:$0xff]
  %v110 = vld [vmem:[%s1 + $0x78] sm:$0xff]
  %v111 = vadd.f32 %v79, %v95
  %v112 = vadd.f32 %v80, %v96
  %v113 = vadd.f32 %v81, %v97
  %v114 = vadd.f32 %v82, %v98
  %v115 = vadd.f32 %v83, %v99
  %v116 = vadd.f32 %v84, %v100
  %v117 = vadd.f32 %v85, %v101
  %v118 = vadd.f32 %v86, %v102
  %v119 = vadd.f32 %v87, %v103
  %v120 = vadd.f32 %v88, %v104
  %v121 = vadd.f32 %v89, %v105
  %v122 = vadd.f32 %v90, %v106
  %v123 = vadd.f32 %v91, %v107
  %v124 = vadd.f32 %v92, %v108
  %v125 = vadd.f32 %v93, %v109
  %v126 = vadd.f32 %v94, %v110
  %v127 = vmax.f32 %v111, 0.0
  %v128 = vmax.f32 %v112, 0.0
  %v129 = vmax.f32 %v113, 0.0
  %v130 = vmax.f32 %v114, 0.0
  %v131 = vmax.f32 %v115, 0.0
  %v132 = vmax.f32 %v116, 0.0
  %v133 = vmax.f32 %v117, 0.0
  %v134 = vmax.f32 %v118, 0.0
  %v135 = vmax.f32 %v119, 0.0
  %v136 = vmax.f32 %v120, 0.0
  %v137 = vmax.f32 %v121, 0.0
  %v138 = vmax.f32 %v122, 0.0
  %v139 = vmax.f32 %v123, 0.0
  %v140 = vmax.f32 %v124, 0.0
  %v141 = vmax.f32 %v125, 0.0
  %v142 = vmax.f32 %v126, 0.0
  %143 = vst [vmem:[%s4] sm:$0xff] %v127
  %144 = vst [vmem:[%s4 + $0x8] sm:$0xff] %v128
  %145 = vst [vmem:[%s4 + $0x10] sm:$0xff] %v129
  %146 = vst [vmem:[%s4 + $0x18] sm:$0xff] %v130
  %147 = vst [vmem:[%s4 + $0x20] sm:$0xff] %v131
  %148 = vst [vmem:[%s4 + $0x28] sm:$0xff] %v132
  %149 = vst [vmem:[%s4 + $0x30] sm:$0xff] %v133
  %150 = vst [vmem:[%s4 + $0x38] sm:$0xff] %v134
  %151 = vst [vmem:[%s4 + $0x40] sm:$0xff] %v135
  %152 = vst [vmem:[%s4 + $0x48] sm:$0xff] %v136
  %153 = vst [vmem:[%s4 + $0x50] sm:$0xff] %v137
  %154 = vst [vmem:[%s4 + $0x58] sm:$0xff] %v138
  %155 = vst [vmem:[%s4 + $0x60] sm:$0xff] %v139
  %156 = vst [vmem:[%s4 + $0x68] sm:$0xff] %v140
  %157 = vst [vmem:[%s4 + $0x70] sm:$0xff] %v141
  %158 = vst [vmem:[%s4 + $0x78] sm:$0xff] %v142
  // Predicated region
  $region18: #{residual_block_forward.11} parent=0 // pred_check
    _
  $region19: #{residual_block_forward.11} parent=0 // pred_check_branch
    %160 = sbr.rel (0) target = $region21
  $region20: #{residual_block_forward.11} parent=0 // pred_region
    _
  $region21: #{residual_block_forward.11} parent=0 // pred_fallthru
    _
  // Predicated region
  $region22: #{residual_block_forward.11} parent=0 // pred_check
    _
  $region23: #{residual_block_forward.11} parent=0 // pred_check_branch
    %162 = sbr.rel (0) target = $region25
  $region24: #{residual_block_forward.11} parent=0 // pred_region
    _
  $region25: #{residual_block_forward.11} parent=0 // pred_fallthru
    _

</llo_original>
